<compile_context>
chip_gen: v5e
topology: v5e:2x2
jax: 0.10.0
libtpu: 0.0.40
codegen_flags: <defaults>
</compile_context>

<pallas_src>
import jax
import jax.numpy as jnp
from jax.experimental import pallas as pl
from jax.experimental.pallas import tpu as pltpu

SUBLANE = 8


def _round_up(x, m):
    return ((x + m - 1) // m) * m


def qnet_kernel(obs_ref, w1_ref, b1_ref, w2_ref, b2_ref, w3_ref, b3_ref, out_ref):
    # obs_ref: [TB, dim_obs] f32 (cast in-kernel: avoids a wrapper pass over obs)
    # w*: bf16 [in, out]; b*: f32 [1, out]; out_ref: [TB, num_act] f32
    x = obs_ref[...].astype(jnp.bfloat16)
    h1 = jnp.dot(x, w1_ref[...], preferred_element_type=jnp.float32)          # [TB, 64] f32
    h1 = jnp.maximum(h1 + b1_ref[...], 0.0)                                    # f32 bias+ReLU (v5e-safe)
    h2 = jnp.dot(h1.astype(jnp.bfloat16), w2_ref[...],
                 preferred_element_type=jnp.float32)                           # [TB, 32] f32
    h2 = jnp.maximum(h2 + b2_ref[...], 0.0)
    out = jnp.dot(h2.astype(jnp.bfloat16), w3_ref[...],
                  preferred_element_type=jnp.float32)                          # [TB, num_act] f32
    out_ref[...] = out + b3_ref[...]


def prepare_params(params):
    """One-time param prep (re-run only on target-network sync): bf16 weights,
    f32 [1, out] biases. Keeps all per-forward wrapper ops out of the hot path."""
    return {
        "w1": params["w1"].astype(jnp.bfloat16),
        "b1": params["b1"].astype(jnp.float32).reshape(1, -1),
        "w2": params["w2"].astype(jnp.bfloat16),
        "b2": params["b2"].astype(jnp.float32).reshape(1, -1),
        "w3": params["w3"].astype(jnp.bfloat16),
        "b3": params["b3"].astype(jnp.float32).reshape(1, -1),
    }


def _choose_tile(B, tb_max):
    """Batch tile: multiple of 8 sublanes, capped at tb_max, and sized so the
    grid has >=2 steps when possible (lets v7x's two TensorCores both work)."""
    b8 = _round_up(B, SUBLANE)
    n_steps = max(2, pl.cdiv(b8, tb_max))
    tb = _round_up(pl.cdiv(b8, n_steps), SUBLANE)
    tb = max(SUBLANE, min(tb, b8))
    return tb


def qnet_forward(obs, prepared, *, tb_max=2048):
    """obs: [B, dim_obs] float32; prepared: output of prepare_params()."""
    B, dim_obs = obs.shape
    h1_dim = prepared["w1"].shape[1]
    h2_dim = prepared["w2"].shape[1]
    num_act = prepared["w3"].shape[1]

    # --- batch tile / padding (only op besides pallas_call in the hot path) ---
    tb = _choose_tile(B, tb_max)
    b_pad = _round_up(B, tb)
    if b_pad != B:
        obs = jnp.pad(obs, ((0, b_pad - B), (0, 0)))
    grid = (b_pad // tb,)

    def batch_map(i):
        return (i, 0)

    def const_map(i):
        return (0, 0)

    in_specs = [
        pl.BlockSpec((tb, dim_obs), batch_map),          # obs tile (pipelined)
        pl.BlockSpec((dim_obs, h1_dim), const_map),      # w1 (VMEM-resident)
        pl.BlockSpec((1, h1_dim), const_map),            # b1
        pl.BlockSpec((h1_dim, h2_dim), const_map),       # w2
        pl.BlockSpec((1, h2_dim), const_map),            # b2
        pl.BlockSpec((h2_dim, num_act), const_map),      # w3 (no lane padding)
        pl.BlockSpec((1, num_act), const_map),           # b3
    ]
    out_spec = pl.BlockSpec((tb, num_act), batch_map)

    flops = 2 * b_pad * (dim_obs * h1_dim + h1_dim * h2_dim + h2_dim * num_act)
    bytes_accessed = (
        b_pad * dim_obs * 4                               # obs (f32)
        + b_pad * num_act * 4                             # out (f32, unpadded)
        + (dim_obs * h1_dim + h1_dim * h2_dim + h2_dim * num_act) * 2  # weights (bf16)
        + (h1_dim + h2_dim + num_act) * 4                 # biases (f32)
    )

    out_padded = pl.pallas_call(
        qnet_kernel,
        out_shape=jax.ShapeDtypeStruct((b_pad, num_act), jnp.float32),
        grid=grid,
        in_specs=in_specs,
        out_specs=out_spec,
        compiler_params=pltpu.CompilerParams(
            dimension_semantics=("parallel",),
        ),
        cost_estimate=pl.CostEstimate(
            flops=flops, transcendentals=0, bytes_accessed=bytes_accessed),
    )(obs, prepared["w1"], prepared["b1"], prepared["w2"], prepared["b2"],
      prepared["w3"], prepared["b3"])

    return out_padded[:B]


def init_qnet_params(key, dim_obs, num_act):
    """Deterministic synthetic init (PyTorch-style uniform fan-in bounds)."""
    keys = jax.random.split(key, 6)

    def linear(kw, kb, fan_in, fan_out):
        bound = 1.0 / jnp.sqrt(fan_in)
        # stored as [in, out] so the kernel can do x @ W
        w = jax.random.uniform(kw, (fan_in, fan_out), jnp.float32, -bound, bound)
        b = jax.random.uniform(kb, (1, fan_out), jnp.float32, -bound, bound)
        return w, b

    w1, b1 = linear(keys[0], keys[1], dim_obs, 64)
    w2, b2 = linear(keys[2], keys[3], 64, 32)
    w3, b3 = linear(keys[4], keys[5], 32, num_act)
    return {"w1": w1, "b1": b1, "w2": w2, "b2": b2, "w3": w3, "b3": b3}


def qnet_reference(obs, params):
    """Pure-JAX reference mirroring the kernel's mixed precision (bf16 dot, f32 acc)."""
    w1 = params["w1"].astype(jnp.bfloat16)
    w2 = params["w2"].astype(jnp.bfloat16)
    w3 = params["w3"].astype(jnp.bfloat16)
    h1 = jnp.dot(obs.astype(jnp.bfloat16), w1, preferred_element_type=jnp.float32)
    h1 = jnp.maximum(h1 + params["b1"], 0.0)
    h2 = jnp.dot(h1.astype(jnp.bfloat16), w2, preferred_element_type=jnp.float32)
    h2 = jnp.maximum(h2 + params["b2"], 0.0)
    out = jnp.dot(h2.astype(jnp.bfloat16), w3, preferred_element_type=jnp.float32)
    return out + params["b3"]


def qnet_reference_f32(obs, params):
    """Full-precision reference of the PyTorch forward (loose sanity check).
    Note: the kernel's bf16 operands are an intentional precision reduction vs.
    the f32 PyTorch QNet; can flip argmax when Q-values are nearly tied."""
    h1 = jnp.maximum(obs @ params["w1"] + params["b1"], 0.0)
    h2 = jnp.maximum(h1 @ params["w2"] + params["b2"], 0.0)
    return h2 @ params["w3"] + params["b3"]


if __name__ == "__main__":
    dim_obs, num_act, batch = 8, 4, 2

    key = jax.random.PRNGKey(0)
    k_params, k_obs = jax.random.split(key)
    params = init_qnet_params(k_params, dim_obs, num_act)
    obs = jax.random.normal(k_obs, (batch, dim_obs), jnp.float32)

    prepared = prepare_params(params)          # one-time (target-sync-time) prep
    out = qnet_forward(obs, prepared)
    out = jax.block_until_ready(out)

    assert out.shape == (batch, num_act)
    # Tight check against the matching mixed-precision reference.
    ref = qnet_reference(obs, params)
    assert jnp.allclose(out, ref, atol=1e-3, rtol=1e-3), (out, ref)
    # Loose sanity check against the full-f32 PyTorch-equivalent forward.
    ref32 = qnet_reference_f32(obs, params)
    assert jnp.allclose(out, ref32, atol=3e-2, rtol=3e-2), (out, ref32)

    print("KERNEL_OK")
</pallas_src>

<mosaic_0001>
module attributes {stable_mosaic.version = 11 : i64} {
  func.func @qnet_kernel(%arg0: i32, %arg1: memref<8x8xf32, #tpu.memory_space<vmem>>, %arg2: memref<8x64xbf16, #tpu.memory_space<vmem>>, %arg3: memref<1x64xf32, #tpu.memory_space<vmem>>, %arg4: memref<64x32xbf16, #tpu.memory_space<vmem>>, %arg5: memref<1x32xf32, #tpu.memory_space<vmem>>, %arg6: memref<32x4xbf16, #tpu.memory_space<vmem>>, %arg7: memref<1x4xf32, #tpu.memory_space<vmem>>, %arg8: memref<8x4xf32, #tpu.memory_space<vmem>>) attributes {dimension_semantics = [#tpu.dimension_semantics<parallel>], iteration_bounds = array<i64: 1>, scalar_prefetch = 0 : i64, scratch_operands = 0 : i64, tpu.core_type = #tpu.core_type<tc>, window_params = [{transform_indices = @transform_0, window_bounds = array<i64: 8, 8>}, {pipeline_mode = #tpu.pipeline_mode<synchronous>, transform_indices = @transform_1, window_bounds = array<i64: 8, 64>}, {pipeline_mode = #tpu.pipeline_mode<synchronous>, transform_indices = @transform_2, window_bounds = array<i64: 1, 64>}, {pipeline_mode = #tpu.pipeline_mode<synchronous>, transform_indices = @transform_3, window_bounds = array<i64: 64, 32>}, {pipeline_mode = #tpu.pipeline_mode<synchronous>, transform_indices = @transform_4, window_bounds = array<i64: 1, 32>}, {pipeline_mode = #tpu.pipeline_mode<synchronous>, transform_indices = @transform_5, window_bounds = array<i64: 32, 4>}, {pipeline_mode = #tpu.pipeline_mode<synchronous>, transform_indices = @transform_6, window_bounds = array<i64: 1, 4>}, {transform_indices = @transform_7, window_bounds = array<i64: 8, 4>}]} {
    %c0 = arith.constant 0 : index
    %c0_0 = arith.constant 0 : index
    %0 = vector.load %arg1[%c0, %c0_0] : memref<8x8xf32, #tpu.memory_space<vmem>>, vector<8x8xf32>
    %1 = arith.truncf %0 : vector<8x8xf32> to vector<8x8xbf16>
    %c0_1 = arith.constant 0 : index
    %c0_2 = arith.constant 0 : index
    %2 = vector.load %arg2[%c0_1, %c0_2] : memref<8x64xbf16, #tpu.memory_space<vmem>>, vector<8x64xbf16>
    %cst = arith.constant dense<0.000000e+00> : vector<8x64xf32>
    %3 = tpu.matmul %1, %2, %cst {dimension_numbers = #tpu.dot_dimension_numbers<[1], [0], [0], [1], [0, 0, 1, 1], [], []>} : vector<8x8xbf16>, vector<8x64xbf16>, vector<8x64xf32> -> vector<8x64xf32>
    %c0_3 = arith.constant 0 : index
    %c0_4 = arith.constant 0 : index
    %4 = vector.load %arg3[%c0_3, %c0_4] : memref<1x64xf32, #tpu.memory_space<vmem>>, vector<1x64xf32>
    %5 = vector.broadcast %4 : vector<1x64xf32> to vector<8x64xf32>
    %6 = arith.addf %3, %5 : vector<8x64xf32>
    %cst_5 = arith.constant 0.000000e+00 : f32
    %7 = vector.broadcast %cst_5 : f32 to vector<8x64xf32>
    %8 = arith.maximumf %6, %7 : vector<8x64xf32>
    %9 = arith.truncf %8 : vector<8x64xf32> to vector<8x64xbf16>
    %c0_6 = arith.constant 0 : index
    %c0_7 = arith.constant 0 : index
    %10 = vector.load %arg4[%c0_6, %c0_7] : memref<64x32xbf16, #tpu.memory_space<vmem>>, vector<64x32xbf16>
    %cst_8 = arith.constant dense<0.000000e+00> : vector<8x32xf32>
    %11 = tpu.matmul %9, %10, %cst_8 {dimension_numbers = #tpu.dot_dimension_numbers<[1], [0], [0], [1], [0, 0, 1, 1], [], []>} : vector<8x64xbf16>, vector<64x32xbf16>, vector<8x32xf32> -> vector<8x32xf32>
    %c0_9 = arith.constant 0 : index
    %c0_10 = arith.constant 0 : index
    %12 = vector.load %arg5[%c0_9, %c0_10] : memref<1x32xf32, #tpu.memory_space<vmem>>, vector<1x32xf32>
    %13 = vector.broadcast %12 : vector<1x32xf32> to vector<8x32xf32>
    %14 = arith.addf %11, %13 : vector<8x32xf32>
    %cst_11 = arith.constant 0.000000e+00 : f32
    %15 = vector.broadcast %cst_11 : f32 to vector<8x32xf32>
    %16 = arith.maximumf %14, %15 : vector<8x32xf32>
    %17 = arith.truncf %16 : vector<8x32xf32> to vector<8x32xbf16>
    %c0_12 = arith.constant 0 : index
    %c0_13 = arith.constant 0 : index
    %18 = vector.load %arg6[%c0_12, %c0_13] : memref<32x4xbf16, #tpu.memory_space<vmem>>, vector<32x4xbf16>
    %cst_14 = arith.constant dense<0.000000e+00> : vector<8x4xf32>
    %19 = tpu.matmul %17, %18, %cst_14 {dimension_numbers = #tpu.dot_dimension_numbers<[1], [0], [0], [1], [0, 0, 1, 1], [], []>} : vector<8x32xbf16>, vector<32x4xbf16>, vector<8x4xf32> -> vector<8x4xf32>
    %c0_15 = arith.constant 0 : index
    %c0_16 = arith.constant 0 : index
    %20 = vector.load %arg7[%c0_15, %c0_16] : memref<1x4xf32, #tpu.memory_space<vmem>>, vector<1x4xf32>
    %21 = vector.broadcast %20 : vector<1x4xf32> to vector<8x4xf32>
    %22 = arith.addf %19, %21 : vector<8x4xf32>
    %c0_17 = arith.constant 0 : index
    %c0_18 = arith.constant 0 : index
    %23 = vector.load %arg8[%c0_17, %c0_18] : memref<8x4xf32, #tpu.memory_space<vmem>>, vector<8x4xf32>
    tpu.vector_store %arg8[%c0_17, %c0_18], %22 {strides = array<i32>} : memref<8x4xf32, #tpu.memory_space<vmem>>, vector<8x4xf32>,
    return
  }
  func.func @transform_0(%arg0: i32) -> (i32, i32) {
    %c0_i32 = arith.constant 0 : i32
    %c0_i32_0 = arith.constant 0 : i32
    return %arg0, %c0_i32 : i32, i32
  }
  func.func @transform_1(%arg0: i32) -> (i32, i32) {
    %c0_i32 = arith.constant 0 : i32
    %c0_i32_0 = arith.constant 0 : i32
    %c0_i32_1 = arith.constant 0 : i32
    return %c0_i32, %c0_i32_0 : i32, i32
  }
  func.func @transform_2(%arg0: i32) -> (i32, i32) {
    %c0_i32 = arith.constant 0 : i32
    %c0_i32_0 = arith.constant 0 : i32
    %c0_i32_1 = arith.constant 0 : i32
    return %c0_i32, %c0_i32_0 : i32, i32
  }
  func.func @transform_3(%arg0: i32) -> (i32, i32) {
    %c0_i32 = arith.constant 0 : i32
    %c0_i32_0 = arith.constant 0 : i32
    %c0_i32_1 = arith.constant 0 : i32
    return %c0_i32, %c0_i32_0 : i32, i32
  }
  func.func @transform_4(%arg0: i32) -> (i32, i32) {
    %c0_i32 = arith.constant 0 : i32
    %c0_i32_0 = arith.constant 0 : i32
    %c0_i32_1 = arith.constant 0 : i32
    return %c0_i32, %c0_i32_0 : i32, i32
  }
  func.func @transform_5(%arg0: i32) -> (i32, i32) {
    %c0_i32 = arith.constant 0 : i32
    %c0_i32_0 = arith.constant 0 : i32
    %c0_i32_1 = arith.constant 0 : i32
    return %c0_i32, %c0_i32_0 : i32, i32
  }
  func.func @transform_6(%arg0: i32) -> (i32, i32) {
    %c0_i32 = arith.constant 0 : i32
    %c0_i32_0 = arith.constant 0 : i32
    %c0_i32_1 = arith.constant 0 : i32
    return %c0_i32, %c0_i32_0 : i32, i32
  }
  func.func @transform_7(%arg0: i32) -> (i32, i32) {
    %c0_i32 = arith.constant 0 : i32
    %c0_i32_0 = arith.constant 0 : i32
    return %arg0, %c0_i32 : i32, i32
  }
}

</mosaic_0001>

<llo_original>
// kernel: tpu_custom_call.1
$region0: #{tpu_custom_call.1}
  #allocation0 [shape = 'u32[]', space=smem, size = 0x4, offset = 0x4, fixed_abs, tag = 'smem constant byte address 0x4 - core index']
  #allocation1 [shape = 'u32[72,128]{1,0:T(1,128)}', space=vmem, size = 0x9000, scoped, tag = 'internal scratch']
  %s0 = inlined_call_operand.vmem [shape: f32[8,8], index: 0, kind: input, shape index: {}]
  %s1 = inlined_call_operand.vmem [shape: bf16[8,64], index: 1, kind: input, shape index: {}]
  %s2 = inlined_call_operand.vmem [shape: f32[1,64], index: 2, kind: input, shape index: {}]
  %s3 = inlined_call_operand.vmem [shape: bf16[64,32], index: 3, kind: input, shape index: {}]
  %s4 = inlined_call_operand.vmem [shape: f32[1,32], index: 4, kind: input, shape index: {}]
  %s5 = inlined_call_operand.vmem [shape: bf16[32,4], index: 5, kind: input, shape index: {}]
  %s6 = inlined_call_operand.vmem [shape: f32[1,4], index: 6, kind: input, shape index: {}]
  %s7 = inlined_call_operand.vmem [shape: f32[8,4], index: 7, kind: output, shape index: {}]
  %s8 = sld [smem:[#allocation0]]
  $region38: #{tpu_custom_call.1} parent=0
    _
  %s10 = ssub.s32 1, %s8
  %s11 = scalar_select 0, %s10, %s8
  // Predicated region
  $region2: #{tpu_custom_call.1} parent=0 // pred_check
    _
  $region3: #{tpu_custom_call.1} parent=0 // pred_check_branch
    %13 = sbr.rel (0) target = $region5
  $region4: #{tpu_custom_call.1} parent=0 // pred_region
    _
  $region5: #{tpu_custom_call.1} parent=0 // pred_fallthru
    _
  // Predicated region
  $region6: #{tpu_custom_call.1} parent=0 // pred_check
    _
  $region7: #{tpu_custom_call.1} parent=0 // pred_check_branch
    %15 = sbr.rel (0) target = $region9
  $region8: #{tpu_custom_call.1} parent=0 // pred_region
    _
  $region9: #{tpu_custom_call.1} parent=0 // pred_fallthru
    _
  // Predicated region
  $region10: #{tpu_custom_call.1} parent=0 // pred_check
    _
  $region11: #{tpu_custom_call.1} parent=0 // pred_check_branch
    %17 = sbr.rel (0) target = $region13
  $region12: #{tpu_custom_call.1} parent=0 // pred_region
    _
  $region13: #{tpu_custom_call.1} parent=0 // pred_fallthru
    _
  // Predicated region
  $region14: #{tpu_custom_call.1} parent=0 // pred_check
    _
  $region15: #{tpu_custom_call.1} parent=0 // pred_check_branch
    %19 = sbr.rel (0) target = $region17
  $region16: #{tpu_custom_call.1} parent=0 // pred_region
    _
  $region17: #{tpu_custom_call.1} parent=0 // pred_fallthru
    _
  // Predicated region
  $region18: #{tpu_custom_call.1} parent=0 // pred_check
    _
  $region19: #{tpu_custom_call.1} parent=0 // pred_check_branch
    %21 = sbr.rel (0) target = $region21
  $region20: #{tpu_custom_call.1} parent=0 // pred_region
    _
  $region21: #{tpu_custom_call.1} parent=0 // pred_fallthru
    _
  // Predicated region
  $region22: #{tpu_custom_call.1} parent=0 // pred_check
    _
  $region23: #{tpu_custom_call.1} parent=0 // pred_check_branch
    %23 = sbr.rel (0) target = $region25
  $region24: #{tpu_custom_call.1} parent=0 // pred_region
    _
  $region25: #{tpu_custom_call.1} parent=0 // pred_fallthru
    _
  // Predicated region
  $region26: #{tpu_custom_call.1} parent=0 // pred_check
    _
  $region27: #{tpu_custom_call.1} parent=0 // pred_check_branch
    %25 = sbr.rel (0) target = $region29
  $region28: #{tpu_custom_call.1} parent=0 // pred_region
    _
  $region29: #{tpu_custom_call.1} parent=0 // pred_fallthru
    _
  %v27 = vld [vmem:[%s0] sm:$0xff]
  %v28 = vpack.c.bf16 %v27, %v27
  %v29 = vld [vmem:[%s1] sm:$0xf]
  %v30 = vld [vmem:[%s2] sm:$0x1]
  %v32 = vperm.slane %v30, 0
  %vm34 = vcmask 64512
  %v36 = vsel %vm34, %v28, 0
  %vm38 = vcmask 1043456
  %v40 = vsel %vm38, %v29, 0
  %42 = vmatpush.bf16.msra.mxu0 0
  %43 = vmatpush.bf16.msra.mxu0 0
  %44 = vmatpush.bf16.msra.mxu0 0
  %45 = vmatpush.bf16.msra.mxu0 0
  %46 = vmatpush.bf16.msra.mxu0 0
  %47 = vmatpush.bf16.msra.mxu0 0
  %48 = vmatpush.bf16.msra.mxu0 0
  %49 = vmatpush.bf16.msra.mxu0 %v40
  %50 = vmatmul.bf16.gmra.mxu0 %v36
  %v51 = vpop.f32.mrf.mxu0
  %v52 = vadd.f32 %v32, %v51
  %v53 = vpop.f32.mrf.mxu0
  %54 = vdwg.mxu0
  %v55 = vmax.f32 %v52, 0.0
  %v56 = vpack.c.bf16 %v55, %v55
  %v57 = vld [vmem:[%s3] sm:$0xf]
  %v58 = vld [vmem:[%s3 + $0x4] sm:$0xf]
  %v59 = vld [vmem:[%s3 + $0x8] sm:$0xf]
  %v60 = vld [vmem:[%s3 + $0xc] sm:$0xf]
  %v61 = vld [vmem:[%s3 + $0x10] sm:$0xf]
  %v62 = vld [vmem:[%s3 + $0x14] sm:$0xf]
  %v63 = vld [vmem:[%s3 + $0x18] sm:$0xf]
  %v64 = vld [vmem:[%s3 + $0x1c] sm:$0xf]
  %v65 = vld [vmem:[%s4] sm:$0x1]
  %v67 = vperm.slane %v65, 0
  %v77 = vunpack.c.l.b16 %v57
  %v78 = vunpack.c.l.b16 %v58
  %v79 = vunpack.c.l.b16 %v59
  %v80 = vunpack.c.l.b16 %v60
  %v81 = vunpack.c.l.b16 %v61
  %v82 = vunpack.c.l.b16 %v62
  %v83 = vunpack.c.l.b16 %v63
  %v84 = vunpack.c.l.b16 %v64
  %v85 = vpack.c.b16 %v78, %v77
  %v86 = vpack.c.b16 %v80, %v79
  %v87 = vpack.c.b16 %v82, %v81
  %v88 = vpack.c.b16 %v84, %v83
  %vm93 = vcmask 523264
  %v95 = vsel %vm93, %v56, 0
  %97 = vmatpush.bf16.msra.mxu0 0
  %98 = vmatpush.bf16.msra.mxu0 0
  %99 = vmatpush.bf16.msra.mxu0 0
  %100 = vmatpush.bf16.msra.mxu0 0
  %101 = vmatpush.bf16.msra.mxu0 %v88
  %102 = vmatpush.bf16.msra.mxu0 %v87
  %103 = vmatpush.bf16.msra.mxu0 %v86
  %104 = vmatpush.bf16.msra.mxu0 %v85
  %105 = vmatmul.bf16.gmra.mxu0 %v95
  %v106 = vpop.f32.mrf.mxu0
  %v107 = vadd.f32 %v67, %v106
  %v108 = vpop.f32.mrf.mxu0
  %109 = vdwg.mxu0
  %v110 = vmax.f32 %v107, 0.0
  %v111 = vpack.c.bf16 %v110, %v110
  %v112 = vld [vmem:[%s5] sm:$0xf]
  %v113 = vld [vmem:[%s5 + $0x4] sm:$0xf]
  %v114 = vld [vmem:[%s5 + $0x8] sm:$0xf]
  %v115 = vld [vmem:[%s5 + $0xc] sm:$0xf]
  %v116 = vld [vmem:[%s6] sm:$0x1]
  %v118 = vperm.slane %v116, 0
  %v124 = vunpack.c.l.b16 %v112
  %v125 = vunpack.c.l.b16 %v113
  %v126 = vunpack.c.l.b16 %v114
  %v127 = vunpack.c.l.b16 %v115
  %v128 = vpack.c.b16 %v125, %v124
  %v129 = vpack.c.b16 %v127, %v126
  %vm132 = vcmask 261120
  %v134 = vsel %vm132, %v111, 0
  %136 = vmatpush.bf16.msra.mxu0 0
  %137 = vmatpush.bf16.msra.mxu0 0
  %138 = vmatpush.bf16.msra.mxu0 0
  %139 = vmatpush.bf16.msra.mxu0 0
  %140 = vmatpush.bf16.msra.mxu0 0
  %141 = vmatpush.bf16.msra.mxu0 0
  %142 = vmatpush.bf16.msra.mxu0 %v129
  %143 = vmatpush.bf16.msra.mxu0 %v128
  %144 = vmatmul.bf16.gmra.mxu0 %v134
  %v145 = vpop.f32.mrf.mxu0
  %v146 = vadd.f32 %v118, %v145
  %v147 = vpop.f32.mrf.mxu0
  %148 = vdwg.mxu0
  %vm149 = vcmask 31744
  %150 = vst.msk [vmem:[%s7] sm:$0xff] %vm149, %v146
  // Predicated region
  $region30: #{tpu_custom_call.1} parent=0 // pred_check
    _
  $region31: #{tpu_custom_call.1} parent=0 // pred_check_branch
    %152 = sbr.rel (0) target = $region33
  $region32: #{tpu_custom_call.1} parent=0 // pred_region
    _
  $region33: #{tpu_custom_call.1} parent=0 // pred_fallthru
    _
  // Predicated region
  $region34: #{tpu_custom_call.1} parent=0 // pred_check
    _
  $region35: #{tpu_custom_call.1} parent=0 // pred_check_branch
    %154 = sbr.rel (0) target = $region37
  $region36: #{tpu_custom_call.1} parent=0 // pred_region
    _
  $region37: #{tpu_custom_call.1} parent=0 // pred_fallthru
    _

</llo_original>
